<compile_context>
chip_gen: v5e
topology: v5e:2x2
jax: 0.10.0
libtpu: 0.0.40
codegen_flags: <defaults>
</compile_context>

<pallas_src>
import functools
import math

import jax
import jax.numpy as jnp
import numpy as np
from jax import lax
from jax.experimental import pallas as pl
from jax.experimental.pallas import tpu as pltpu  # noqa: F401  (TPU backend)

_LRELU_SLOPE = 0.2
_ACT_GAIN = math.sqrt(2.0)  # bias_act default gain for 'lrelu'


# ----------------------------------------------------------------------------
# Fused Pallas kernel: input normalize + embed + 8 FC layers (gains pre-folded)
# ----------------------------------------------------------------------------
def _mapping_kernel(z_ref, c_ref, ew_ref, eb_ref, w0_ref, b0_ref, ws_ref, bs_ref,
                    out_ref, *, num_layers):
    f32 = jnp.float32

    def _norm2(v):
        # normalize_2nd_moment over the feature (lane) axis
        return v * lax.rsqrt(jnp.mean(v * v, axis=1, keepdims=True) + 1e-8)

    def _lrelu(acc, b):
        # bias_act(..., act='lrelu'): add (pre-scaled) bias, slope 0.2, gain sqrt(2)
        acc = acc + b
        acc = jnp.where(acc >= 0.0, acc, _LRELU_SLOPE * acc)
        return acc * _ACT_GAIN

    # --- input block: normalize z; embed(c) (linear FC, gain folded into ew) then normalize ---
    zn = _norm2(z_ref[...])
    y = _norm2(jnp.dot(c_ref[...], ew_ref[...], preferred_element_type=f32) + eb_ref[...])

    # --- fc0 on cat([zn, y], dim=1): single K=(Z+E)=256 MXU contraction ---
    x01 = jnp.concatenate([zn, y], axis=-1)                       # (B, Z+E), lane-aligned
    x = _lrelu(jnp.dot(x01, w0_ref[...], preferred_element_type=f32), b0_ref[...])

    # --- fc1 .. fc{num_layers-1}: statically unrolled, weights resident in VMEM ---
    for i in range(num_layers - 1):
        acc = jnp.dot(x, ws_ref[i], preferred_element_type=f32)
        x = _lrelu(acc, bs_ref[pl.ds(i, 1), :])

    # --- single dense (B, W) lane-aligned store; num_ws repeat happens in the wrapper ---
    out_ref[...] = x.astype(out_ref.dtype)


# ----------------------------------------------------------------------------
# One-time parameter re-layout (call ONCE, outside the per-step jit path):
#   transpose to (in, out), stack fc1..fc{n-1}, fold weight_gain / bias_gain.
# ----------------------------------------------------------------------------
def prepare_mapping_params(params, *, num_layers=8, lr_multiplier=0.01):
    f32 = jnp.float32
    assert num_layers >= 2, "kernel layout assumes at least 2 FC layers"

    E, C = params["embed_w"].shape                      # embed_features, c_dim
    ZE = params["fc0_w"].shape[1]                       # z_dim + embed_features
    LF = params["fc1_w"].shape[1]                       # layer_features
    W = params[f"fc{num_layers - 1}_w"].shape[0]        # w_dim
    # Stacked fc1.. layout requires layer_features == w_dim (module default).
    assert LF == W, "stacked layer layout assumes layer_features == w_dim"
    for i in range(1, num_layers):
        assert params[f"fc{i}_w"].shape == (W, LF)

    embed_wgain = 1.0 / math.sqrt(C)                    # embed: lr_mult=1
    fc0_wgain = lr_multiplier / math.sqrt(ZE)
    fc_wgain = lr_multiplier / math.sqrt(LF)
    bias_gain = lr_multiplier

    prepared = {
        "ew_s": (jnp.transpose(params["embed_w"]) * embed_wgain).astype(f32),   # (C, E)
        "eb":   params["embed_b"].reshape(1, E).astype(f32),                    # bias_gain=1
        "w0_s": (jnp.transpose(params["fc0_w"]) * fc0_wgain).astype(f32),       # (Z+E, W)
        "b0":   (params["fc0_b"].reshape(1, W) * bias_gain).astype(f32),
        "ws_s": jnp.stack([jnp.transpose(params[f"fc{i}_w"]) * fc_wgain
                           for i in range(1, num_layers)]).astype(f32),         # (n-1, LF, W)
        "bs_s": jnp.stack([params[f"fc{i}_b"] * bias_gain
                           for i in range(1, num_layers)]).astype(f32),         # (n-1, W)
    }
    if "w_avg" in params:
        prepared["w_avg"] = params["w_avg"].astype(f32)
    return prepared


# ----------------------------------------------------------------------------
# Hot-path wrapper: single pallas_call + wrapper-side num_ws broadcast
# ----------------------------------------------------------------------------
def mapping_network_forward(prepared, z, c, *, num_ws,
                            truncation_psi=1.0, truncation_cutoff=None):
    f32 = jnp.float32
    B = z.shape[0]
    W = prepared["w0_s"].shape[1]
    num_layers = int(prepared["bs_s"].shape[0]) + 1

    kernel = functools.partial(_mapping_kernel, num_layers=num_layers)

    w = pl.pallas_call(
        kernel,
        out_shape=jax.ShapeDtypeStruct((B, W), f32),
    )(z.astype(f32), c.astype(f32),
      prepared["ew_s"], prepared["eb"], prepared["w0_s"], prepared["b0"],
      prepared["ws_s"], prepared["bs_s"])

    # torch: x.unsqueeze(1).repeat([1, num_ws, 1]) -- done here so the kernel stores 1 tile.
    w_bcast = jnp.broadcast_to(w[:, None, :], (B, num_ws, W))

    # TODO(synk): training-time w_avg EMA buffer update is a stateful training-only side effect;
    # the eval forward (self.training == False) skips it, as reproduced here.
    if truncation_psi != 1.0:
        w_avg = prepared.get("w_avg", jnp.zeros((W,), f32))
        if truncation_cutoff is None:
            w_bcast = w_avg + truncation_psi * (w_bcast - w_avg)
        else:
            trunc = w_avg + truncation_psi * (w_bcast[:, :truncation_cutoff] - w_avg)
            w_bcast = w_bcast.at[:, :truncation_cutoff].set(trunc)
    return w_bcast


# ----------------------------------------------------------------------------
# Pure-JAX reference (mirrors the torch module) for correctness checking
# ----------------------------------------------------------------------------
def reference_forward(params, z, c, *, num_ws, num_layers=8, lr_multiplier=0.01):
    prec = lax.Precision.HIGHEST

    def norm2(v):
        return v * lax.rsqrt(jnp.mean(v * v, axis=1, keepdims=True) + 1e-8)

    def fully_connected(x, w, b, act, lr_mult):
        wg = lr_mult / math.sqrt(w.shape[1])
        out = jnp.dot(x, (w * wg).T, precision=prec) + b * lr_mult
        if act == "lrelu":
            out = jnp.where(out >= 0, out, _LRELU_SLOPE * out) * _ACT_GAIN
        return out

    x = norm2(z.astype(jnp.float32))
    y = norm2(fully_connected(c.astype(jnp.float32), params["embed_w"], params["embed_b"],
                              "linear", 1.0))
    x = jnp.concatenate([x, y], axis=1)
    for i in range(num_layers):
        x = fully_connected(x, params[f"fc{i}_w"], params[f"fc{i}_b"], "lrelu", lr_multiplier)
    return jnp.broadcast_to(x[:, None, :], (x.shape[0], num_ws, x.shape[1]))


# ----------------------------------------------------------------------------
if __name__ == "__main__":
    z_dim, c_dim, w_dim, num_ws, num_layers = 128, 32, 128, 10, 8
    lr_multiplier = 0.01
    batch = 8
    embed_features = w_dim   # module default (embed_features=None -> w_dim)
    layer_features = w_dim   # module default (layer_features=None -> w_dim)

    key = jax.random.PRNGKey(0)
    k_z, k_c, k_ew, k_eb, *k_fc = jax.random.split(key, 4 + 2 * num_layers)

    z = jax.random.normal(k_z, (batch, z_dim), jnp.float32)
    c = jax.random.normal(k_c, (batch, c_dim), jnp.float32)

    # Parameter shapes mirror FullyConnectedLayer.__init__ (weight = randn(out,in)/lr_multiplier).
    # Biases are drawn small & non-zero so the bias/bias_gain path is actually exercised
    # (the module inits them to bias_init=0; forward semantics don't depend on init values).
    features_list = [z_dim + embed_features] + [layer_features] * (num_layers - 1) + [w_dim]
    params = {
        "embed_w": jax.random.normal(k_ew, (embed_features, c_dim), jnp.float32),
        "embed_b": 0.1 * jax.random.normal(k_eb, (embed_features,), jnp.float32),
    }
    for i in range(num_layers):
        fin, fout = features_list[i], features_list[i + 1]
        params[f"fc{i}_w"] = jax.random.normal(k_fc[2 * i], (fout, fin), jnp.float32) / lr_multiplier
        params[f"fc{i}_b"] = jax.random.normal(k_fc[2 * i + 1], (fout,), jnp.float32)

    # One-time (per checkpoint) re-layout + gain folding: runs eagerly, NOT on the hot path.
    prepared = prepare_mapping_params(params, num_layers=num_layers, lr_multiplier=lr_multiplier)

    fwd = jax.jit(functools.partial(mapping_network_forward, num_ws=num_ws))
    w = jax.block_until_ready(fwd(prepared, z, c))

    assert w.shape == (batch, num_ws, w_dim), w.shape
    assert w.dtype == jnp.float32

    ref = jax.block_until_ready(reference_forward(params, z, c, num_ws=num_ws,
                                                  num_layers=num_layers,
                                                  lr_multiplier=lr_multiplier))
    np.testing.assert_allclose(np.asarray(w), np.asarray(ref), rtol=1e-3, atol=1e-3)

    print("KERNEL_OK")
</pallas_src>

<mosaic_0001>
module attributes {stable_mosaic.version = 11 : i64} {
  func.func @_mapping_kernel(%arg0: memref<8x128xf32, #tpu.memory_space<vmem>>, %arg1: memref<8x32xf32, #tpu.memory_space<vmem>>, %arg2: memref<32x128xf32, #tpu.memory_space<vmem>>, %arg3: memref<1x128xf32, #tpu.memory_space<vmem>>, %arg4: memref<256x128xf32, #tpu.memory_space<vmem>>, %arg5: memref<1x128xf32, #tpu.memory_space<vmem>>, %arg6: memref<7x128x128xf32, #tpu.memory_space<vmem>>, %arg7: memref<7x128xf32, #tpu.memory_space<vmem>>, %arg8: memref<8x128xf32, #tpu.memory_space<vmem>>) attributes {dimension_semantics = [], scalar_prefetch = 0 : i64, scratch_operands = 0 : i64, tpu.core_type = #tpu.core_type<tc>} {
    %c0 = arith.constant 0 : index
    %c0_0 = arith.constant 0 : index
    %0 = vector.load %arg0[%c0, %c0_0] : memref<8x128xf32, #tpu.memory_space<vmem>>, vector<8x128xf32>
    %1 = arith.mulf %0, %0 : vector<8x128xf32>
    %cst = arith.constant dense<0.000000e+00> : vector<8xf32>
    %2 = vector.multi_reduction <add>, %1, %cst [1] : vector<8x128xf32> to vector<8xf32>
    %3 = vector.shape_cast %2 : vector<8xf32> to vector<8x1xf32>
    %cst_1 = arith.constant 1.280000e+02 : f32
    %4 = vector.broadcast %cst_1 : f32 to vector<8x1xf32>
    %5 = arith.divf %3, %4 : vector<8x1xf32>
    %cst_2 = arith.constant 9.99999993E-9 : f32
    %6 = vector.broadcast %cst_2 : f32 to vector<8x1xf32>
    %7 = arith.addf %5, %6 : vector<8x1xf32>
    %8 = math.rsqrt %7 : vector<8x1xf32>
    %9 = vector.broadcast %8 : vector<8x1xf32> to vector<8x128xf32>
    %10 = arith.mulf %0, %9 : vector<8x128xf32>
    %c0_3 = arith.constant 0 : index
    %c0_4 = arith.constant 0 : index
    %11 = vector.load %arg1[%c0_3, %c0_4] : memref<8x32xf32, #tpu.memory_space<vmem>>, vector<8x32xf32>
    %c0_5 = arith.constant 0 : index
    %c0_6 = arith.constant 0 : index
    %12 = vector.load %arg2[%c0_5, %c0_6] : memref<32x128xf32, #tpu.memory_space<vmem>>, vector<32x128xf32>
    %cst_7 = arith.constant dense<0.000000e+00> : vector<8x128xf32>
    %13 = tpu.matmul %11, %12, %cst_7 {dimension_numbers = #tpu.dot_dimension_numbers<[1], [0], [0], [1], [0, 0, 1, 1], [], []>} : vector<8x32xf32>, vector<32x128xf32>, vector<8x128xf32> -> vector<8x128xf32>
    %c0_8 = arith.constant 0 : index
    %c0_9 = arith.constant 0 : index
    %14 = vector.load %arg3[%c0_8, %c0_9] : memref<1x128xf32, #tpu.memory_space<vmem>>, vector<1x128xf32>
    %15 = vector.broadcast %14 : vector<1x128xf32> to vector<8x128xf32>
    %16 = arith.addf %13, %15 : vector<8x128xf32>
    %17 = arith.mulf %16, %16 : vector<8x128xf32>
    %cst_10 = arith.constant dense<0.000000e+00> : vector<8xf32>
    %18 = vector.multi_reduction <add>, %17, %cst_10 [1] : vector<8x128xf32> to vector<8xf32>
    %19 = vector.shape_cast %18 : vector<8xf32> to vector<8x1xf32>
    %cst_11 = arith.constant 1.280000e+02 : f32
    %20 = vector.broadcast %cst_11 : f32 to vector<8x1xf32>
    %21 = arith.divf %19, %20 : vector<8x1xf32>
    %cst_12 = arith.constant 9.99999993E-9 : f32
    %22 = vector.broadcast %cst_12 : f32 to vector<8x1xf32>
    %23 = arith.addf %21, %22 : vector<8x1xf32>
    %24 = math.rsqrt %23 : vector<8x1xf32>
    %25 = vector.broadcast %24 : vector<8x1xf32> to vector<8x128xf32>
    %26 = arith.mulf %16, %25 : vector<8x128xf32>
    %27 = tpu.concatenate %10, %26 in 1 : vector<8x128xf32>, vector<8x128xf32> -> vector<8x256xf32>
    %c0_13 = arith.constant 0 : index
    %c0_14 = arith.constant 0 : index
    %28 = vector.load %arg4[%c0_13, %c0_14] : memref<256x128xf32, #tpu.memory_space<vmem>>, vector<256x128xf32>
    %cst_15 = arith.constant dense<0.000000e+00> : vector<8x128xf32>
    %29 = tpu.matmul %27, %28, %cst_15 {dimension_numbers = #tpu.dot_dimension_numbers<[1], [0], [0], [1], [0, 0, 1, 1], [], []>} : vector<8x256xf32>, vector<256x128xf32>, vector<8x128xf32> -> vector<8x128xf32>
    %c0_16 = arith.constant 0 : index
    %c0_17 = arith.constant 0 : index
    %30 = vector.load %arg5[%c0_16, %c0_17] : memref<1x128xf32, #tpu.memory_space<vmem>>, vector<1x128xf32>
    %31 = vector.broadcast %30 : vector<1x128xf32> to vector<8x128xf32>
    %32 = arith.addf %29, %31 : vector<8x128xf32>
    %cst_18 = arith.constant 0.000000e+00 : f32
    %33 = vector.broadcast %cst_18 : f32 to vector<8x128xf32>
    %34 = arith.cmpf oge, %32, %33 : vector<8x128xf32>
    %cst_19 = arith.constant 2.000000e-01 : f32
    %35 = vector.broadcast %cst_19 : f32 to vector<8x128xf32>
    %36 = arith.mulf %35, %32 : vector<8x128xf32>
    %37 = arith.select %34, %32, %36 : vector<8x128xi1>, vector<8x128xf32>
    %cst_20 = arith.constant 1.41421354 : f32
    %38 = vector.broadcast %cst_20 : f32 to vector<8x128xf32>
    %39 = arith.mulf %37, %38 : vector<8x128xf32>
    %c0_21 = arith.constant 0 : index
    %c0_22 = arith.constant 0 : index
    %c0_23 = arith.constant 0 : index
    %40 = vector.load %arg6[%c0_21, %c0_22, %c0_23] : memref<7x128x128xf32, #tpu.memory_space<vmem>>, vector<1x128x128xf32>
    %41 = vector.shape_cast %40 : vector<1x128x128xf32> to vector<128x128xf32>
    %cst_24 = arith.constant dense<0.000000e+00> : vector<8x128xf32>
    %42 = tpu.matmul %39, %41, %cst_24 {dimension_numbers = #tpu.dot_dimension_numbers<[1], [0], [0], [1], [0, 0, 1, 1], [], []>} : vector<8x128xf32>, vector<128x128xf32>, vector<8x128xf32> -> vector<8x128xf32>
    %c0_25 = arith.constant 0 : index
    %c0_26 = arith.constant 0 : index
    %43 = vector.load %arg7[%c0_25, %c0_26] : memref<7x128xf32, #tpu.memory_space<vmem>>, vector<1x128xf32>
    %44 = vector.broadcast %43 : vector<1x128xf32> to vector<8x128xf32>
    %45 = arith.addf %42, %44 : vector<8x128xf32>
    %cst_27 = arith.constant 0.000000e+00 : f32
    %46 = vector.broadcast %cst_27 : f32 to vector<8x128xf32>
    %47 = arith.cmpf oge, %45, %46 : vector<8x128xf32>
    %cst_28 = arith.constant 2.000000e-01 : f32
    %48 = vector.broadcast %cst_28 : f32 to vector<8x128xf32>
    %49 = arith.mulf %48, %45 : vector<8x128xf32>
    %50 = arith.select %47, %45, %49 : vector<8x128xi1>, vector<8x128xf32>
    %cst_29 = arith.constant 1.41421354 : f32
    %51 = vector.broadcast %cst_29 : f32 to vector<8x128xf32>
    %52 = arith.mulf %50, %51 : vector<8x128xf32>
    %c1 = arith.constant 1 : index
    %c0_30 = arith.constant 0 : index
    %c0_31 = arith.constant 0 : index
    %53 = vector.load %arg6[%c1, %c0_30, %c0_31] : memref<7x128x128xf32, #tpu.memory_space<vmem>>, vector<1x128x128xf32>
    %54 = vector.shape_cast %53 : vector<1x128x128xf32> to vector<128x128xf32>
    %cst_32 = arith.constant dense<0.000000e+00> : vector<8x128xf32>
    %55 = tpu.matmul %52, %54, %cst_32 {dimension_numbers = #tpu.dot_dimension_numbers<[1], [0], [0], [1], [0, 0, 1, 1], [], []>} : vector<8x128xf32>, vector<128x128xf32>, vector<8x128xf32> -> vector<8x128xf32>
    %c1_33 = arith.constant 1 : index
    %c0_34 = arith.constant 0 : index
    %56 = vector.load %arg7[%c1_33, %c0_34] : memref<7x128xf32, #tpu.memory_space<vmem>>, vector<1x128xf32>
    %57 = vector.broadcast %56 : vector<1x128xf32> to vector<8x128xf32>
    %58 = arith.addf %55, %57 : vector<8x128xf32>
    %cst_35 = arith.constant 0.000000e+00 : f32
    %59 = vector.broadcast %cst_35 : f32 to vector<8x128xf32>
    %60 = arith.cmpf oge, %58, %59 : vector<8x128xf32>
    %cst_36 = arith.constant 2.000000e-01 : f32
    %61 = vector.broadcast %cst_36 : f32 to vector<8x128xf32>
    %62 = arith.mulf %61, %58 : vector<8x128xf32>
    %63 = arith.select %60, %58, %62 : vector<8x128xi1>, vector<8x128xf32>
    %cst_37 = arith.constant 1.41421354 : f32
    %64 = vector.broadcast %cst_37 : f32 to vector<8x128xf32>
    %65 = arith.mulf %63, %64 : vector<8x128xf32>
    %c2 = arith.constant 2 : index
    %c0_38 = arith.constant 0 : index
    %c0_39 = arith.constant 0 : index
    %66 = vector.load %arg6[%c2, %c0_38, %c0_39] : memref<7x128x128xf32, #tpu.memory_space<vmem>>, vector<1x128x128xf32>
    %67 = vector.shape_cast %66 : vector<1x128x128xf32> to vector<128x128xf32>
    %cst_40 = arith.constant dense<0.000000e+00> : vector<8x128xf32>
    %68 = tpu.matmul %65, %67, %cst_40 {dimension_numbers = #tpu.dot_dimension_numbers<[1], [0], [0], [1], [0, 0, 1, 1], [], []>} : vector<8x128xf32>, vector<128x128xf32>, vector<8x128xf32> -> vector<8x128xf32>
    %c2_41 = arith.constant 2 : index
    %c0_42 = arith.constant 0 : index
    %69 = vector.load %arg7[%c2_41, %c0_42] : memref<7x128xf32, #tpu.memory_space<vmem>>, vector<1x128xf32>
    %70 = vector.broadcast %69 : vector<1x128xf32> to vector<8x128xf32>
    %71 = arith.addf %68, %70 : vector<8x128xf32>
    %cst_43 = arith.constant 0.000000e+00 : f32
    %72 = vector.broadcast %cst_43 : f32 to vector<8x128xf32>
    %73 = arith.cmpf oge, %71, %72 : vector<8x128xf32>
    %cst_44 = arith.constant 2.000000e-01 : f32
    %74 = vector.broadcast %cst_44 : f32 to vector<8x128xf32>
    %75 = arith.mulf %74, %71 : vector<8x128xf32>
    %76 = arith.select %73, %71, %75 : vector<8x128xi1>, vector<8x128xf32>
    %cst_45 = arith.constant 1.41421354 : f32
    %77 = vector.broadcast %cst_45 : f32 to vector<8x128xf32>
    %78 = arith.mulf %76, %77 : vector<8x128xf32>
    %c3 = arith.constant 3 : index
    %c0_46 = arith.constant 0 : index
    %c0_47 = arith.constant 0 : index
    %79 = vector.load %arg6[%c3, %c0_46, %c0_47] : memref<7x128x128xf32, #tpu.memory_space<vmem>>, vector<1x128x128xf32>
    %80 = vector.shape_cast %79 : vector<1x128x128xf32> to vector<128x128xf32>
    %cst_48 = arith.constant dense<0.000000e+00> : vector<8x128xf32>
    %81 = tpu.matmul %78, %80, %cst_48 {dimension_numbers = #tpu.dot_dimension_numbers<[1], [0], [0], [1], [0, 0, 1, 1], [], []>} : vector<8x128xf32>, vector<128x128xf32>, vector<8x128xf32> -> vector<8x128xf32>
    %c3_49 = arith.constant 3 : index
    %c0_50 = arith.constant 0 : index
    %82 = vector.load %arg7[%c3_49, %c0_50] : memref<7x128xf32, #tpu.memory_space<vmem>>, vector<1x128xf32>
    %83 = vector.broadcast %82 : vector<1x128xf32> to vector<8x128xf32>
    %84 = arith.addf %81, %83 : vector<8x128xf32>
    %cst_51 = arith.constant 0.000000e+00 : f32
    %85 = vector.broadcast %cst_51 : f32 to vector<8x128xf32>
    %86 = arith.cmpf oge, %84, %85 : vector<8x128xf32>
    %cst_52 = arith.constant 2.000000e-01 : f32
    %87 = vector.broadcast %cst_52 : f32 to vector<8x128xf32>
    %88 = arith.mulf %87, %84 : vector<8x128xf32>
    %89 = arith.select %86, %84, %88 : vector<8x128xi1>, vector<8x128xf32>
    %cst_53 = arith.constant 1.41421354 : f32
    %90 = vector.broadcast %cst_53 : f32 to vector<8x128xf32>
    %91 = arith.mulf %89, %90 : vector<8x128xf32>
    %c4 = arith.constant 4 : index
    %c0_54 = arith.constant 0 : index
    %c0_55 = arith.constant 0 : index
    %92 = vector.load %arg6[%c4, %c0_54, %c0_55] : memref<7x128x128xf32, #tpu.memory_space<vmem>>, vector<1x128x128xf32>
    %93 = vector.shape_cast %92 : vector<1x128x128xf32> to vector<128x128xf32>
    %cst_56 = arith.constant dense<0.000000e+00> : vector<8x128xf32>
    %94 = tpu.matmul %91, %93, %cst_56 {dimension_numbers = #tpu.dot_dimension_numbers<[1], [0], [0], [1], [0, 0, 1, 1], [], []>} : vector<8x128xf32>, vector<128x128xf32>, vector<8x128xf32> -> vector<8x128xf32>
    %c4_57 = arith.constant 4 : index
    %c0_58 = arith.constant 0 : index
    %95 = vector.load %arg7[%c4_57, %c0_58] : memref<7x128xf32, #tpu.memory_space<vmem>>, vector<1x128xf32>
    %96 = vector.broadcast %95 : vector<1x128xf32> to vector<8x128xf32>
    %97 = arith.addf %94, %96 : vector<8x128xf32>
    %cst_59 = arith.constant 0.000000e+00 : f32
    %98 = vector.broadcast %cst_59 : f32 to vector<8x128xf32>
    %99 = arith.cmpf oge, %97, %98 : vector<8x128xf32>
    %cst_60 = arith.constant 2.000000e-01 : f32
    %100 = vector.broadcast %cst_60 : f32 to vector<8x128xf32>
    %101 = arith.mulf %100, %97 : vector<8x128xf32>
    %102 = arith.select %99, %97, %101 : vector<8x128xi1>, vector<8x128xf32>
    %cst_61 = arith.constant 1.41421354 : f32
    %103 = vector.broadcast %cst_61 : f32 to vector<8x128xf32>
    %104 = arith.mulf %102, %103 : vector<8x128xf32>
    %c5 = arith.constant 5 : index
    %c0_62 = arith.constant 0 : index
    %c0_63 = arith.constant 0 : index
    %105 = vector.load %arg6[%c5, %c0_62, %c0_63] : memref<7x128x128xf32, #tpu.memory_space<vmem>>, vector<1x128x128xf32>
    %106 = vector.shape_cast %105 : vector<1x128x128xf32> to vector<128x128xf32>
    %cst_64 = arith.constant dense<0.000000e+00> : vector<8x128xf32>
    %107 = tpu.matmul %104, %106, %cst_64 {dimension_numbers = #tpu.dot_dimension_numbers<[1], [0], [0], [1], [0, 0, 1, 1], [], []>} : vector<8x128xf32>, vector<128x128xf32>, vector<8x128xf32> -> vector<8x128xf32>
    %c5_65 = arith.constant 5 : index
    %c0_66 = arith.constant 0 : index
    %108 = vector.load %arg7[%c5_65, %c0_66] : memref<7x128xf32, #tpu.memory_space<vmem>>, vector<1x128xf32>
    %109 = vector.broadcast %108 : vector<1x128xf32> to vector<8x128xf32>
    %110 = arith.addf %107, %109 : vector<8x128xf32>
    %cst_67 = arith.constant 0.000000e+00 : f32
    %111 = vector.broadcast %cst_67 : f32 to vector<8x128xf32>
    %112 = arith.cmpf oge, %110, %111 : vector<8x128xf32>
    %cst_68 = arith.constant 2.000000e-01 : f32
    %113 = vector.broadcast %cst_68 : f32 to vector<8x128xf32>
    %114 = arith.mulf %113, %110 : vector<8x128xf32>
    %115 = arith.select %112, %110, %114 : vector<8x128xi1>, vector<8x128xf32>
    %cst_69 = arith.constant 1.41421354 : f32
    %116 = vector.broadcast %cst_69 : f32 to vector<8x128xf32>
    %117 = arith.mulf %115, %116 : vector<8x128xf32>
    %c6 = arith.constant 6 : index
    %c0_70 = arith.constant 0 : index
    %c0_71 = arith.constant 0 : index
    %118 = vector.load %arg6[%c6, %c0_70, %c0_71] : memref<7x128x128xf32, #tpu.memory_space<vmem>>, vector<1x128x128xf32>
    %119 = vector.shape_cast %118 : vector<1x128x128xf32> to vector<128x128xf32>
    %cst_72 = arith.constant dense<0.000000e+00> : vector<8x128xf32>
    %120 = tpu.matmul %117, %119, %cst_72 {dimension_numbers = #tpu.dot_dimension_numbers<[1], [0], [0], [1], [0, 0, 1, 1], [], []>} : vector<8x128xf32>, vector<128x128xf32>, vector<8x128xf32> -> vector<8x128xf32>
    %c6_73 = arith.constant 6 : index
    %c0_74 = arith.constant 0 : index
    %121 = vector.load %arg7[%c6_73, %c0_74] : memref<7x128xf32, #tpu.memory_space<vmem>>, vector<1x128xf32>
    %122 = vector.broadcast %121 : vector<1x128xf32> to vector<8x128xf32>
    %123 = arith.addf %120, %122 : vector<8x128xf32>
    %cst_75 = arith.constant 0.000000e+00 : f32
    %124 = vector.broadcast %cst_75 : f32 to vector<8x128xf32>
    %125 = arith.cmpf oge, %123, %124 : vector<8x128xf32>
    %cst_76 = arith.constant 2.000000e-01 : f32
    %126 = vector.broadcast %cst_76 : f32 to vector<8x128xf32>
    %127 = arith.mulf %126, %123 : vector<8x128xf32>
    %128 = arith.select %125, %123, %127 : vector<8x128xi1>, vector<8x128xf32>
    %cst_77 = arith.constant 1.41421354 : f32
    %129 = vector.broadcast %cst_77 : f32 to vector<8x128xf32>
    %130 = arith.mulf %128, %129 : vector<8x128xf32>
    %c0_78 = arith.constant 0 : index
    %c0_79 = arith.constant 0 : index
    %131 = vector.load %arg8[%c0_78, %c0_79] : memref<8x128xf32, #tpu.memory_space<vmem>>, vector<8x128xf32>
    tpu.vector_store %arg8[%c0_78, %c0_79], %130 {strides = array<i32>} : memref<8x128xf32, #tpu.memory_space<vmem>>, vector<8x128xf32>,
    return
  }
}

</mosaic_0001>

<llo_original>
// kernel: mapping_network_forward.1
$region0: #{mapping_network_forward.1}
  #allocation0 [shape = 'u32[]', space=smem, size = 0x4, offset = 0x4, fixed_abs, tag = 'smem constant byte address 0x4 - core index']
  #allocation1 [shape = 'u32[72,128]{1,0:T(1,128)}', space=vmem, size = 0x9000, scoped, tag = 'internal scratch']
  %s0 = inlined_call_operand.hbm [shape: f32[8,128], index: 0, kind: input, shape index: {}]
  %s1 = inlined_call_operand.hbm [shape: f32[8,32], index: 1, kind: input, shape index: {}]
  %s2 = inlined_call_operand.hbm [shape: f32[32,128], index: 2, kind: input, shape index: {}]
  %s3 = inlined_call_operand.vmem [shape: f32[1,128], index: 3, kind: input, shape index: {}]
  %s4 = inlined_call_operand.hbm [shape: f32[256,128], index: 4, kind: input, shape index: {}]
  %s5 = inlined_call_operand.hbm [shape: f32[1,128], index: 5, kind: input, shape index: {}]
  %s6 = inlined_call_operand.hbm [shape: f32[7,128,128], index: 6, kind: input, shape index: {}]
  %s7 = inlined_call_operand.hbm [shape: f32[7,128], index: 7, kind: input, shape index: {}]
  %s8 = inlined_call_operand.vmem [shape: f32[8,128], index: 8, kind: output, shape index: {}]
  %s9 = sld [smem:[#allocation0]]
  $region70: #{mapping_network_forward.1} parent=0
    _
  %s11 = ssub.s32 1, %s9
  %s12 = scalar_select 0, %s11, %s9
  $region1: #{mapping_network_forward.1} parent=0
    #allocation2 [shape = 'u8[4096]{0}', space=vmem, size = 0x1000, scoped, tag = 'input window, operand 0, single buffered']
    #allocation3 [shape = 's32[1]{0}', space=sflag, size = 0x4, scoped, tag = 'scoped memory for mapping_network_forward.1']
    #allocation4 [shape = 'u8[4096]{0}', space=vmem, size = 0x1000, scoped, tag = 'input window, operand 1, single buffered']
    #allocation5 [shape = 's32[1]{0}', space=sflag, size = 0x4, scoped, tag = 'scoped memory for mapping_network_forward.1']
    #allocation6 [shape = 'u8[16384]{0}', space=vmem, size = 0x4000, scoped, tag = 'input window, operand 2, single buffered']
    #allocation7 [shape = 'u8[131072]{0}', space=vmem, size = 0x20000, scoped, tag = 'input window, operand 4, single buffered']
    #allocation8 [shape = 's32[1]{0}', space=sflag, size = 0x4, scoped, tag = 'scoped memory for mapping_network_forward.1']
    #allocation9 [shape = 'u8[512]{0}', space=vmem, size = 0x400, scoped, tag = 'input window, operand 5, single buffered']
    #allocation10 [shape = 'u8[458752]{0}', space=vmem, size = 0x70000, scoped, tag = 'input window, operand 6, single buffered']
    #allocation11 [shape = 's32[1]{0}', space=sflag, size = 0x4, scoped, tag = 'scoped memory for mapping_network_forward.1']
    #allocation12 [shape = 'u8[4096]{0}', space=vmem, size = 0x1000, scoped, tag = 'input window, operand 7, single buffered']
    %13 = vsyncpa [#allocation3], 0
    %14 = vsyncpa [#allocation5], 0
    %15 = vsyncpa [#allocation8], 0
    %16 = vsyncpa [#allocation11], 0
    // Predicated region
    $region2: #{mapping_network_forward.1} parent=1 // pred_check
      _
    $region3: #{mapping_network_forward.1} parent=1 // pred_check_branch
      %18 = sbr.rel (0) target = $region5
    $region4: #{mapping_network_forward.1} parent=1 // pred_region
      %20 = vsyncadd [#allocation3], 0
      %s22 = sshll.u32 %s0, 4
      %s23 = int_to_ptr.hbm [resolvable:$true] %s22
      %s24 = sshll.u32 [#allocation2], 4
      %s25 = int_to_ptr.vmem [resolvable:$true] %s24
      %27 = dma.hbm_to_vmem [thread:$0]  %s23, 128, %s25, [#allocation3]
    $region5: #{mapping_network_forward.1} parent=1 // pred_fallthru
      _
    // Predicated region
    $region6: #{mapping_network_forward.1} parent=1 // pred_check
      _
    $region7: #{mapping_network_forward.1} parent=1 // pred_check_branch
      %29 = sbr.rel (0) target = $region9
    $region8: #{mapping_network_forward.1} parent=1 // pred_region
      %31 = vsyncadd [#allocation5], 0
      %s33 = sshll.u32 %s1, 4
      %s34 = int_to_ptr.hbm [resolvable:$true] %s33
      %s35 = sshll.u32 [#allocation4], 4
      %s36 = int_to_ptr.vmem [resolvable:$true] %s35
      %38 = dma.hbm_to_vmem [thread:$0]  %s34, 128, %s36, [#allocation5]
    $region9: #{mapping_network_forward.1} parent=1 // pred_fallthru
      _
    // Predicated region
    $region10: #{mapping_network_forward.1} parent=1 // pred_check
      _
    $region11: #{mapping_network_forward.1} parent=1 // pred_check_branch
      %40 = sbr.rel (0) target = $region13
    $region12: #{mapping_network_forward.1} parent=1 // pred_region
      %42 = vsyncadd [#allocation5], 0
      %s43 = sshll.u32 %s2, 4
      %s44 = int_to_ptr.hbm [resolvable:$true] %s43
      %s45 = sshll.u32 [#allocation6], 4
      %s46 = int_to_ptr.vmem [resolvable:$true] %s45
      %51 = dma.hbm_to_vmem [thread:$0]  %s44, 512, %s46, [#allocation5], 128, 128, 8
    $region13: #{mapping_network_forward.1} parent=1 // pred_fallthru
      _
    // Predicated region
    $region14: #{mapping_network_forward.1} parent=1 // pred_check
      _
    $region15: #{mapping_network_forward.1} parent=1 // pred_check_branch
      %53 = sbr.rel (0) target = $region17
    $region16: #{mapping_network_forward.1} parent=1 // pred_region
      _
    $region17: #{mapping_network_forward.1} parent=1 // pred_fallthru
      _
    // Predicated region
    $region18: #{mapping_network_forward.1} parent=1 // pred_check
      _
    $region19: #{mapping_network_forward.1} parent=1 // pred_check_branch
      %55 = sbr.rel (0) target = $region21
    $region20: #{mapping_network_forward.1} parent=1 // pred_region
      %57 = vsyncadd [#allocation8], 0
      %s58 = sshll.u32 %s4, 4
      %s59 = int_to_ptr.hbm [resolvable:$true] %s58
      %s60 = sshll.u32 [#allocation7], 4
      %s61 = int_to_ptr.vmem [resolvable:$true] %s60
      %66 = dma.hbm_to_vmem [thread:$0]  %s59, 4096, %s61, [#allocation8], 128, 128, 8
    $region21: #{mapping_network_forward.1} parent=1 // pred_fallthru
      _
    // Predicated region
    $region22: #{mapping_network_forward.1} parent=1 // pred_check
      _
    $region23: #{mapping_network_forward.1} parent=1 // pred_check_branch
      %68 = sbr.rel (0) target = $region25
    $region24: #{mapping_network_forward.1} parent=1 // pred_region
      %70 = vsyncadd [#allocation8], 0
      %s72 = sshll.u32 %s5, 4
      %s73 = int_to_ptr.hbm [resolvable:$true] %s72
      %s74 = sshll.u32 [#allocation9], 4
      %s75 = int_to_ptr.vmem [resolvable:$true] %s74
      %77 = dma.hbm_to_vmem [thread:$0]  %s73, 16, %s75, [#allocation8]
    $region25: #{mapping_network_forward.1} parent=1 // pred_fallthru
      _
    // Predicated region
    $region26: #{mapping_network_forward.1} parent=1 // pred_check
      _
    $region27: #{mapping_network_forward.1} parent=1 // pred_check_branch
      %79 = sbr.rel (0) target = $region29
    $region28: #{mapping_network_forward.1} parent=1 // pred_region
      %81 = vsyncadd [#allocation11], 0
      %s82 = sshll.u32 %s6, 4
      %s83 = int_to_ptr.hbm [resolvable:$true] %s82
      %s84 = sshll.u32 [#allocation10], 4
      %s85 = int_to_ptr.vmem [resolvable:$true] %s84
      %90 = dma.hbm_to_vmem [thread:$0]  %s83, 14336, %s85, [#allocation11], 128, 128, 8
    $region29: #{mapping_network_forward.1} parent=1 // pred_fallthru
      _
    // Predicated region
    $region30: #{mapping_network_forward.1} parent=1 // pred_check
      _
    $region31: #{mapping_network_forward.1} parent=1 // pred_check_branch
      %92 = sbr.rel (0) target = $region33
    $region32: #{mapping_network_forward.1} parent=1 // pred_region
      %94 = vsyncadd [#allocation11], 0
      %s96 = sshll.u32 %s7, 4
      %s97 = int_to_ptr.hbm [resolvable:$true] %s96
      %s98 = sshll.u32 [#allocation12], 4
      %s99 = int_to_ptr.vmem [resolvable:$true] %s98
      %101 = dma.hbm_to_vmem [thread:$0]  %s97, 128, %s99, [#allocation11]
    $region33: #{mapping_network_forward.1} parent=1 // pred_fallthru
      _
    // Predicated region
    $region34: #{mapping_network_forward.1} parent=1 // pred_check
      _
    $region35: #{mapping_network_forward.1} parent=1 // pred_check_branch
      %103 = sbr.rel (0) target = $region37
    $region36: #{mapping_network_forward.1} parent=1 // pred_region
      %105 = dma.done [#allocation3], 128
    $region37: #{mapping_network_forward.1} parent=1 // pred_fallthru
      _
    // Predicated region
    $region38: #{mapping_network_forward.1} parent=1 // pred_check
      _
    $region39: #{mapping_network_forward.1} parent=1 // pred_check_branch
      %107 = sbr.rel (0) target = $region41
    $region40: #{mapping_network_forward.1} parent=1 // pred_region
      %109 = dma.done [#allocation5], 128
    $region41: #{mapping_network_forward.1} parent=1 // pred_fallthru
      _
    // Predicated region
    $region42: #{mapping_network_forward.1} parent=1 // pred_check
      _
    $region43: #{mapping_network_forward.1} parent=1 // pred_check_branch
      %111 = sbr.rel (0) target = $region45
    $region44: #{mapping_network_forward.1} parent=1 // pred_region
      %113 = dma.done [#allocation5], 512
    $region45: #{mapping_network_forward.1} parent=1 // pred_fallthru
      _
    // Predicated region
    $region46: #{mapping_network_forward.1} parent=1 // pred_check
      _
    $region47: #{mapping_network_forward.1} parent=1 // pred_check_branch
      %115 = sbr.rel (0) target = $region49
    $region48: #{mapping_network_forward.1} parent=1 // pred_region
      %117 = dma.done [#allocation8], 4096
    $region49: #{mapping_network_forward.1} parent=1 // pred_fallthru
      _
    // Predicated region
    $region50: #{mapping_network_forward.1} parent=1 // pred_check
      _
    $region51: #{mapping_network_forward.1} parent=1 // pred_check_branch
      %119 = sbr.rel (0) target = $region53
    $region52: #{mapping_network_forward.1} parent=1 // pred_region
      %121 = dma.done [#allocation8], 16
    $region53: #{mapping_network_forward.1} parent=1 // pred_fallthru
      _
    // Predicated region
    $region54: #{mapping_network_forward.1} parent=1 // pred_check
      _
    $region55: #{mapping_network_forward.1} parent=1 // pred_check_branch
      %123 = sbr.rel (0) target = $region57
    $region56: #{mapping_network_forward.1} parent=1 // pred_region
      %125 = dma.done [#allocation11], 14336
    $region57: #{mapping_network_forward.1} parent=1 // pred_fallthru
      _
    // Predicated region
    $region58: #{mapping_network_forward.1} parent=1 // pred_check
      _
    $region59: #{mapping_network_forward.1} parent=1 // pred_check_branch
      %127 = sbr.rel (0) target = $region61
    $region60: #{mapping_network_forward.1} parent=1 // pred_region
      %129 = dma.done [#allocation11], 128
    $region61: #{mapping_network_forward.1} parent=1 // pred_fallthru
      _
    %v130 = vld [vmem:[#allocation2] sm:$0xff]
    %v131 = vmul.f32 %v130, %v130
    %132 = vadd.xlane.f32.xlu0 %v131
    %v133 = vpop.xlane.xlu0 %132
    %v134 = vrcp.pop 128.0
    %v135 = vmul.f32 128.0, %v134
    %v136 = vsub.f32 1.0, %v135
    %v137 = vmul.f32 %v134, %v136
    %v138 = vadd.f32 %v134, %v137
    %vm139 = vweird.f32 %v134
    %v140 = vsel %vm139, %v134, %v138
    %v141 = vmul.f32 %v133, %v140
    %v142 = vadd.f32 %v141, 1e-08
    %v143 = vrsqrt.pop %v142
    %v144 = vmul.f32 %v143, %v142
    %v145 = vmul.f32 %v144, %v143
    %v146 = vmul.f32 0.5, %v145
    %v147 = vsub.f32 1.5, %v146
    %v148 = vmul.f32 %v143, %v147
    %vm149 = vweird.f32 %v142
    %vm150 = vweird.f32 %v143
    %vm151 = vmor %vm149, %vm150
    %v152 = vsel %vm151, %v143, %v148
    %v153 = vmul.f32 %v130, %v152
    %v154 = vld [vmem:[#allocation4] sm:$0xff]
    %v155 = vld [vmem:[#allocation6] sm:$0xff]
    %v156 = vld [vmem:[#allocation6 + $0x8] sm:$0xff]
    %v157 = vld [vmem:[#allocation6 + $0x10] sm:$0xff]
    %v158 = vld [vmem:[#allocation6 + $0x18] sm:$0xff]
    %v159 = vld [vmem:[%s3] sm:$0x1]
    %v161 = vperm.slane %v159, 0
    %vm163 = vcmask 261120
    %v165 = vsel %vm163, %v154, 0
    %167 = vmatpush.msra.mxu0 0.0
    %168 = vmatpush.msra.mxu0 0.0
    %169 = vmatpush.msra.mxu0 0.0
    %170 = vmatpush.msra.mxu0 0.0
    %171 = vmatpush.msra.mxu0 0.0
    %172 = vmatpush.msra.mxu0 0.0
    %173 = vmatpush.msra.mxu0 0.0
    %174 = vmatpush.msra.mxu0 0.0
    %175 = vmatpush.msra.mxu0 0.0
    %176 = vmatpush.msra.mxu0 0.0
    %177 = vmatpush.msra.mxu0 0.0
    %178 = vmatpush.msra.mxu0 0.0
    %179 = vmatpush.msra.mxu0 %v158
    %180 = vmatpush.msra.mxu0 %v157
    %181 = vmatpush.msra.mxu0 %v156
    %182 = vmatpush.msra.mxu0 %v155
    %183 = vmatmul.f32.gmra.mxu0 %v165
    %v184 = vpop.f32.mrf.mxu0
    %v185 = vadd.f32 %v161, %v184
    %186 = vdwg.mxu0
    %v187 = vmul.f32 %v185, %v185
    %188 = vadd.xlane.f32.xlu0 %v187
    %v189 = vpop.xlane.xlu0 %188
    %v190 = vmul.f32 %v189, %v140
    %v191 = vadd.f32 %v190, 1e-08
    %v192 = vrsqrt.pop %v191
    %v193 = vmul.f32 %v192, %v191
    %v194 = vmul.f32 %v193, %v192
    %v195 = vmul.f32 0.5, %v194
    %v196 = vsub.f32 1.5, %v195
    %v197 = vmul.f32 %v192, %v196
    %vm198 = vweird.f32 %v191
    %vm199 = vweird.f32 %v192
    %vm200 = vmor %vm198, %vm199
    %v201 = vsel %vm200, %v192, %v197
    %v202 = vmul.f32 %v185, %v201
    %v203 = vld [vmem:[#allocation7] sm:$0xff]
    %v204 = vld [vmem:[#allocation7 + $0x8] sm:$0xff]
    %v205 = vld [vmem:[#allocation7 + $0x10] sm:$0xff]
    %v206 = vld [vmem:[#allocation7 + $0x18] sm:$0xff]
    %v207 = vld [vmem:[#allocation7 + $0x20] sm:$0xff]
    %v208 = vld [vmem:[#allocation7 + $0x28] sm:$0xff]
    %v209 = vld [vmem:[#allocation7 + $0x30] sm:$0xff]
    %v210 = vld [vmem:[#allocation7 + $0x38] sm:$0xff]
    %v211 = vld [vmem:[#allocation7 + $0x40] sm:$0xff]
    %v212 = vld [vmem:[#allocation7 + $0x48] sm:$0xff]
    %v213 = vld [vmem:[#allocation7 + $0x50] sm:$0xff]
    %v214 = vld [vmem:[#allocation7 + $0x58] sm:$0xff]
    %v215 = vld [vmem:[#allocation7 + $0x60] sm:$0xff]
    %v216 = vld [vmem:[#allocation7 + $0x68] sm:$0xff]
    %v217 = vld [vmem:[#allocation7 + $0x70] sm:$0xff]
    %v218 = vld [vmem:[#allocation7 + $0x78] sm:$0xff]
    %v219 = vld [vmem:[#allocation7 + $0x80] sm:$0xff]
    %v220 = vld [vmem:[#allocation7 + $0x88] sm:$0xff]
    %v221 = vld [vmem:[#allocation7 + $0x90] sm:$0xff]
    %v222 = vld [vmem:[#allocation7 + $0x98] sm:$0xff]
    %v223 = vld [vmem:[#allocation7 + $0xa0] sm:$0xff]
    %v224 = vld [vmem:[#allocation7 + $0xa8] sm:$0xff]
    %v225 = vld [vmem:[#allocation7 + $0xb0] sm:$0xff]
    %v226 = vld [vmem:[#allocation7 + $0xb8] sm:$0xff]
    %v227 = vld [vmem:[#allocation7 + $0xc0] sm:$0xff]
    %v228 = vld [vmem:[#allocation7 + $0xc8] sm:$0xff]
    %v229 = vld [vmem:[#allocation7 + $0xd0] sm:$0xff]
    %v230 = vld [vmem:[#allocation7 + $0xd8] sm:$0xff]
    %v231 = vld [vmem:[#allocation7 + $0xe0] sm:$0xff]
    %v232 = vld [vmem:[#allocation7 + $0xe8] sm:$0xff]
    %v233 = vld [vmem:[#allocation7 + $0xf0] sm:$0xff]
    %v234 = vld [vmem:[#allocation7 + $0xf8] sm:$0xff]
    %v235 = vld [vmem:[#allocation9] sm:$0x1]
    %v237 = vperm.slane %v235, 0
    %239 = vmatpush.msra.mxu0 %v218
    %240 = vmatpush.msra.mxu0 %v217
    %241 = vmatpush.msra.mxu0 %v216
    %242 = vmatpush.msra.mxu0 %v215
    %243 = vmatpush.msra.mxu0 %v214
    %244 = vmatpush.msra.mxu0 %v213
    %245 = vmatpush.msra.mxu0 %v212
    %246 = vmatpush.msra.mxu0 %v211
    %247 = vmatpush.msra.mxu0 %v210
    %248 = vmatpush.msra.mxu0 %v209
    %249 = vmatpush.msra.mxu0 %v208
    %250 = vmatpush.msra.mxu0 %v207
    %251 = vmatpush.msra.mxu0 %v206
    %252 = vmatpush.msra.mxu0 %v205
    %253 = vmatpush.msra.mxu0 %v204
    %254 = vmatpush.msra.mxu0 %v203
    %255 = vmatmul.f32.gmra.mxu0 %v153
    %v256 = vpop.f32.mrf.mxu0
    %v257 = vadd.f32 %v237, %v256
    %258 = vdwg.mxu0
    %259 = vmatpush.msra.mxu0 %v234
    %260 = vmatpush.msra.mxu0 %v233
    %261 = vmatpush.msra.mxu0 %v232
    %262 = vmatpush.msra.mxu0 %v231
    %263 = vmatpush.msra.mxu0 %v230
    %264 = vmatpush.msra.mxu0 %v229
    %265 = vmatpush.msra.mxu0 %v228
    %266 = vmatpush.msra.mxu0 %v227
    %267 = vmatpush.msra.mxu0 %v226
    %268 = vmatpush.msra.mxu0 %v225
    %269 = vmatpush.msra.mxu0 %v224
    %270 = vmatpush.msra.mxu0 %v223
    %271 = vmatpush.msra.mxu0 %v222
    %272 = vmatpush.msra.mxu0 %v221
    %273 = vmatpush.msra.mxu0 %v220
    %274 = vmatpush.msra.mxu0 %v219
    %275 = vmatmul.f32.gmra.mxu0 %v202
    %v276 = vpop.f32.mrf.mxu0
    %v277 = vadd.f32 %v257, %v276
    %278 = vdwg.mxu0
    %vm279 = vcmp.ge.f32.partialorder %v277, 0.0
    %v280 = vmul.f32 %v277, 0.2
    %v281 = vsel %vm279, %v277, %v280
    %v282 = vmul.f32 %v281, 1.4142135
    %v283 = vld [vmem:[#allocation10] sm:$0xff]
    %v284 = vld [vmem:[#allocation10 + $0x8] sm:$0xff]
    %v285 = vld [vmem:[#allocation10 + $0x10] sm:$0xff]
    %v286 = vld [vmem:[#allocation10 + $0x18] sm:$0xff]
    %v287 = vld [vmem:[#allocation10 + $0x20] sm:$0xff]
    %v288 = vld [vmem:[#allocation10 + $0x28] sm:$0xff]
    %v289 = vld [vmem:[#allocation10 + $0x30] sm:$0xff]
    %v290 = vld [vmem:[#allocation10 + $0x38] sm:$0xff]
    %v291 = vld [vmem:[#allocation10 + $0x40] sm:$0xff]
    %v292 = vld [vmem:[#allocation10 + $0x48] sm:$0xff]
    %v293 = vld [vmem:[#allocation10 + $0x50] sm:$0xff]
    %v294 = vld [vmem:[#allocation10 + $0x58] sm:$0xff]
    %v295 = vld [vmem:[#allocation10 + $0x60] sm:$0xff]
    %v296 = vld [vmem:[#allocation10 + $0x68] sm:$0xff]
    %v297 = vld [vmem:[#allocation10 + $0x70] sm:$0xff]
    %v298 = vld [vmem:[#allocation10 + $0x78] sm:$0xff]
    %v299 = vld [vmem:[#allocation12] sm:$0x1]
    %v300 = vperm.slane %v299, 0
    %301 = vmatpush.msra.mxu0 %v298
    %302 = vmatpush.msra.mxu0 %v297
    %303 = vmatpush.msra.mxu0 %v296
    %304 = vmatpush.msra.mxu0 %v295
    %305 = vmatpush.msra.mxu0 %v294
    %306 = vmatpush.msra.mxu0 %v293
    %307 = vmatpush.msra.mxu0 %v292
    %308 = vmatpush.msra.mxu0 %v291
    %309 = vmatpush.msra.mxu0 %v290
    %310 = vmatpush.msra.mxu0 %v289
    %311 = vmatpush.msra.mxu0 %v288
    %312 = vmatpush.msra.mxu0 %v287
    %313 = vmatpush.msra.mxu0 %v286
    %314 = vmatpush.msra.mxu0 %v285
    %315 = vmatpush.msra.mxu0 %v284
    %316 = vmatpush.msra.mxu0 %v283
    %317 = vmatmul.f32.gmra.mxu0 %v282
    %v318 = vpop.f32.mrf.mxu0
    %v319 = vadd.f32 %v300, %v318
    %320 = vdwg.mxu0
    %vm321 = vcmp.ge.f32.partialorder %v319, 0.0
    %v322 = vmul.f32 %v319, 0.2
    %v323 = vsel %vm321, %v319, %v322
    %v324 = vmul.f32 %v323, 1.4142135
    %s325 = scalar_lea.vmem [#allocation10], 128
    %v326 = vld [vmem:[%s325] sm:$0xff]
    %v327 = vld [vmem:[%s325 + $0x8] sm:$0xff]
    %v328 = vld [vmem:[%s325 + $0x10] sm:$0xff]
    %v329 = vld [vmem:[%s325 + $0x18] sm:$0xff]
    %v330 = vld [vmem:[%s325 + $0x20] sm:$0xff]
    %v331 = vld [vmem:[%s325 + $0x28] sm:$0xff]
    %v332 = vld [vmem:[%s325 + $0x30] sm:$0xff]
    %v333 = vld [vmem:[%s325 + $0x38] sm:$0xff]
    %v334 = vld [vmem:[%s325 + $0x40] sm:$0xff]
    %v335 = vld [vmem:[%s325 + $0x48] sm:$0xff]
    %v336 = vld [vmem:[%s325 + $0x50] sm:$0xff]
    %v337 = vld [vmem:[%s325 + $0x58] sm:$0xff]
    %v338 = vld [vmem:[%s325 + $0x60] sm:$0xff]
    %v339 = vld [vmem:[%s325 + $0x68] sm:$0xff]
    %v340 = vld [vmem:[%s325 + $0x70] sm:$0xff]
    %v341 = vld [vmem:[%s325 + $0x78] sm:$0xff]
    %v342 = vld [vmem:[#allocation12 + $0x1] sm:$0x1]
    %v343 = vperm.slane %v342, 0
    %344 = vmatpush.msra.mxu0 %v341
    %345 = vmatpush.msra.mxu0 %v340
    %346 = vmatpush.msra.mxu0 %v339
    %347 = vmatpush.msra.mxu0 %v338
    %348 = vmatpush.msra.mxu0 %v337
    %349 = vmatpush.msra.mxu0 %v336
    %350 = vmatpush.msra.mxu0 %v335
    %351 = vmatpush.msra.mxu0 %v334
    %352 = vmatpush.msra.mxu0 %v333
    %353 = vmatpush.msra.mxu0 %v332
    %354 = vmatpush.msra.mxu0 %v331
    %355 = vmatpush.msra.mxu0 %v330
    %356 = vmatpush.msra.mxu0 %v329
    %357 = vmatpush.msra.mxu0 %v328
    %358 = vmatpush.msra.mxu0 %v327
    %359 = vmatpush.msra.mxu0 %v326
    %360 = vmatmul.f32.gmra.mxu0 %v324
    %v361 = vpop.f32.mrf.mxu0
    %v362 = vadd.f32 %v343, %v361
    %363 = vdwg.mxu0
    %vm364 = vcmp.ge.f32.partialorder %v362, 0.0
    %v365 = vmul.f32 %v362, 0.2
    %v366 = vsel %vm364, %v362, %v365
    %v367 = vmul.f32 %v366, 1.4142135
    %s368 = scalar_lea.vmem [#allocation10], 256
    %v369 = vld [vmem:[%s368] sm:$0xff]
    %v370 = vld [vmem:[%s368 + $0x8] sm:$0xff]
    %v371 = vld [vmem:[%s368 + $0x10] sm:$0xff]
    %v372 = vld [vmem:[%s368 + $0x18] sm:$0xff]
    %v373 = vld [vmem:[%s368 + $0x20] sm:$0xff]
    %v374 = vld [vmem:[%s368 + $0x28] sm:$0xff]
    %v375 = vld [vmem:[%s368 + $0x30] sm:$0xff]
    %v376 = vld [vmem:[%s368 + $0x38] sm:$0xff]
    %v377 = vld [vmem:[%s368 + $0x40] sm:$0xff]
    %v378 = vld [vmem:[%s368 + $0x48] sm:$0xff]
    %v379 = vld [vmem:[%s368 + $0x50] sm:$0xff]
    %v380 = vld [vmem:[%s368 + $0x58] sm:$0xff]
    %v381 = vld [vmem:[%s368 + $0x60] sm:$0xff]
    %v382 = vld [vmem:[%s368 + $0x68] sm:$0xff]
    %v383 = vld [vmem:[%s368 + $0x70] sm:$0xff]
    %v384 = vld [vmem:[%s368 + $0x78] sm:$0xff]
    %v385 = vld [vmem:[#allocation12 + $0x2] sm:$0x1]
    %v386 = vperm.slane %v385, 0
    %387 = vmatpush.msra.mxu0 %v384
    %388 = vmatpush.msra.mxu0 %v383
    %389 = vmatpush.msra.mxu0 %v382
    %390 = vmatpush.msra.mxu0 %v381
    %391 = vmatpush.msra.mxu0 %v380
    %392 = vmatpush.msra.mxu0 %v379
    %393 = vmatpush.msra.mxu0 %v378
    %394 = vmatpush.msra.mxu0 %v377
    %395 = vmatpush.msra.mxu0 %v376
    %396 = vmatpush.msra.mxu0 %v375
    %397 = vmatpush.msra.mxu0 %v374
    %398 = vmatpush.msra.mxu0 %v373
    %399 = vmatpush.msra.mxu0 %v372
    %400 = vmatpush.msra.mxu0 %v371
    %401 = vmatpush.msra.mxu0 %v370
    %402 = vmatpush.msra.mxu0 %v369
    %403 = vmatmul.f32.gmra.mxu0 %v367
    %v404 = vpop.f32.mrf.mxu0
    %v405 = vadd.f32 %v386, %v404
    %406 = vdwg.mxu0
    %vm407 = vcmp.ge.f32.partialorder %v405, 0.0
    %v408 = vmul.f32 %v405, 0.2
    %v409 = vsel %vm407, %v405, %v408
    %v410 = vmul.f32 %v409, 1.4142135
    %s411 = scalar_lea.vmem [#allocation10], 384
    %v412 = vld [vmem:[%s411] sm:$0xff]
    %v413 = vld [vmem:[%s411 + $0x8] sm:$0xff]
    %v414 = vld [vmem:[%s411 + $0x10] sm:$0xff]
    %v415 = vld [vmem:[%s411 + $0x18] sm:$0xff]
    %v416 = vld [vmem:[%s411 + $0x20] sm:$0xff]
    %v417 = vld [vmem:[%s411 + $0x28] sm:$0xff]
    %v418 = vld [vmem:[%s411 + $0x30] sm:$0xff]
    %v419 = vld [vmem:[%s411 + $0x38] sm:$0xff]
    %v420 = vld [vmem:[%s411 + $0x40] sm:$0xff]
    %v421 = vld [vmem:[%s411 + $0x48] sm:$0xff]
    %v422 = vld [vmem:[%s411 + $0x50] sm:$0xff]
    %v423 = vld [vmem:[%s411 + $0x58] sm:$0xff]
    %v424 = vld [vmem:[%s411 + $0x60] sm:$0xff]
    %v425 = vld [vmem:[%s411 + $0x68] sm:$0xff]
    %v426 = vld [vmem:[%s411 + $0x70] sm:$0xff]
    %v427 = vld [vmem:[%s411 + $0x78] sm:$0xff]
    %v428 = vld [vmem:[#allocation12 + $0x3] sm:$0x1]
    %v429 = vperm.slane %v428, 0
    %430 = vmatpush.msra.mxu0 %v427
    %431 = vmatpush.msra.mxu0 %v426
    %432 = vmatpush.msra.mxu0 %v425
    %433 = vmatpush.msra.mxu0 %v424
    %434 = vmatpush.msra.mxu0 %v423
    %435 = vmatpush.msra.mxu0 %v422
    %436 = vmatpush.msra.mxu0 %v421
    %437 = vmatpush.msra.mxu0 %v420
    %438 = vmatpush.msra.mxu0 %v419
    %439 = vmatpush.msra.mxu0 %v418
    %440 = vmatpush.msra.mxu0 %v417
    %441 = vmatpush.msra.mxu0 %v416
    %442 = vmatpush.msra.mxu0 %v415
    %443 = vmatpush.msra.mxu0 %v414
    %444 = vmatpush.msra.mxu0 %v413
    %445 = vmatpush.msra.mxu0 %v412
    %446 = vmatmul.f32.gmra.mxu0 %v410
    %v447 = vpop.f32.mrf.mxu0
    %v448 = vadd.f32 %v429, %v447
    %449 = vdwg.mxu0
    %vm450 = vcmp.ge.f32.partialorder %v448, 0.0
    %v451 = vmul.f32 %v448, 0.2
    %v452 = vsel %vm450, %v448, %v451
    %v453 = vmul.f32 %v452, 1.4142135
    %s454 = scalar_lea.vmem [#allocation10], 512
    %v455 = vld [vmem:[%s454] sm:$0xff]
    %v456 = vld [vmem:[%s454 + $0x8] sm:$0xff]
    %v457 = vld [vmem:[%s454 + $0x10] sm:$0xff]
    %v458 = vld [vmem:[%s454 + $0x18] sm:$0xff]
    %v459 = vld [vmem:[%s454 + $0x20] sm:$0xff]
    %v460 = vld [vmem:[%s454 + $0x28] sm:$0xff]
    %v461 = vld [vmem:[%s454 + $0x30] sm:$0xff]
    %v462 = vld [vmem:[%s454 + $0x38] sm:$0xff]
    %v463 = vld [vmem:[%s454 + $0x40] sm:$0xff]
    %v464 = vld [vmem:[%s454 + $0x48] sm:$0xff]
    %v465 = vld [vmem:[%s454 + $0x50] sm:$0xff]
    %v466 = vld [vmem:[%s454 + $0x58] sm:$0xff]
    %v467 = vld [vmem:[%s454 + $0x60] sm:$0xff]
    %v468 = vld [vmem:[%s454 + $0x68] sm:$0xff]
    %v469 = vld [vmem:[%s454 + $0x70] sm:$0xff]
    %v470 = vld [vmem:[%s454 + $0x78] sm:$0xff]
    %v471 = vld [vmem:[#allocation12 + $0x4] sm:$0x1]
    %v472 = vperm.slane %v471, 0
    %473 = vmatpush.msra.mxu0 %v470
    %474 = vmatpush.msra.mxu0 %v469
    %475 = vmatpush.msra.mxu0 %v468
    %476 = vmatpush.msra.mxu0 %v467
    %477 = vmatpush.msra.mxu0 %v466
    %478 = vmatpush.msra.mxu0 %v465
    %479 = vmatpush.msra.mxu0 %v464
    %480 = vmatpush.msra.mxu0 %v463
    %481 = vmatpush.msra.mxu0 %v462
    %482 = vmatpush.msra.mxu0 %v461
    %483 = vmatpush.msra.mxu0 %v460
    %484 = vmatpush.msra.mxu0 %v459
    %485 = vmatpush.msra.mxu0 %v458
    %486 = vmatpush.msra.mxu0 %v457
    %487 = vmatpush.msra.mxu0 %v456
    %488 = vmatpush.msra.mxu0 %v455
    %489 = vmatmul.f32.gmra.mxu0 %v453
    %v490 = vpop.f32.mrf.mxu0
    %v491 = vadd.f32 %v472, %v490
    %492 = vdwg.mxu0
    %vm493 = vcmp.ge.f32.partialorder %v491, 0.0
    %v494 = vmul.f32 %v491, 0.2
    %v495 = vsel %vm493, %v491, %v494
    %v496 = vmul.f32 %v495, 1.4142135
    %s497 = scalar_lea.vmem [#allocation10], 640
    %v498 = vld [vmem:[%s497] sm:$0xff]
    %v499 = vld [vmem:[%s497 + $0x8] sm:$0xff]
    %v500 = vld [vmem:[%s497 + $0x10] sm:$0xff]
    %v501 = vld [vmem:[%s497 + $0x18] sm:$0xff]
    %v502 = vld [vmem:[%s497 + $0x20] sm:$0xff]
    %v503 = vld [vmem:[%s497 + $0x28] sm:$0xff]
    %v504 = vld [vmem:[%s497 + $0x30] sm:$0xff]
    %v505 = vld [vmem:[%s497 + $0x38] sm:$0xff]
    %v506 = vld [vmem:[%s497 + $0x40] sm:$0xff]
    %v507 = vld [vmem:[%s497 + $0x48] sm:$0xff]
    %v508 = vld [vmem:[%s497 + $0x50] sm:$0xff]
    %v509 = vld [vmem:[%s497 + $0x58] sm:$0xff]
    %v510 = vld [vmem:[%s497 + $0x60] sm:$0xff]
    %v511 = vld [vmem:[%s497 + $0x68] sm:$0xff]
    %v512 = vld [vmem:[%s497 + $0x70] sm:$0xff]
    %v513 = vld [vmem:[%s497 + $0x78] sm:$0xff]
    %v514 = vld [vmem:[#allocation12 + $0x5] sm:$0x1]
    %v515 = vperm.slane %v514, 0
    %516 = vmatpush.msra.mxu0 %v513
    %517 = vmatpush.msra.mxu0 %v512
    %518 = vmatpush.msra.mxu0 %v511
    %519 = vmatpush.msra.mxu0 %v510
    %520 = vmatpush.msra.mxu0 %v509
    %521 = vmatpush.msra.mxu0 %v508
    %522 = vmatpush.msra.mxu0 %v507
    %523 = vmatpush.msra.mxu0 %v506
    %524 = vmatpush.msra.mxu0 %v505
    %525 = vmatpush.msra.mxu0 %v504
    %526 = vmatpush.msra.mxu0 %v503
    %527 = vmatpush.msra.mxu0 %v502
    %528 = vmatpush.msra.mxu0 %v501
    %529 = vmatpush.msra.mxu0 %v500
    %530 = vmatpush.msra.mxu0 %v499
    %531 = vmatpush.msra.mxu0 %v498
    %532 = vmatmul.f32.gmra.mxu0 %v496
    %v533 = vpop.f32.mrf.mxu0
    %v534 = vadd.f32 %v515, %v533
    %535 = vdwg.mxu0
    %vm536 = vcmp.ge.f32.partialorder %v534, 0.0
    %v537 = vmul.f32 %v534, 0.2
    %v538 = vsel %vm536, %v534, %v537
    %v539 = vmul.f32 %v538, 1.4142135
    %s540 = scalar_lea.vmem [#allocation10], 768
    %v541 = vld [vmem:[%s540] sm:$0xff]
    %v542 = vld [vmem:[%s540 + $0x8] sm:$0xff]
    %v543 = vld [vmem:[%s540 + $0x10] sm:$0xff]
    %v544 = vld [vmem:[%s540 + $0x18] sm:$0xff]
    %v545 = vld [vmem:[%s540 + $0x20] sm:$0xff]
    %v546 = vld [vmem:[%s540 + $0x28] sm:$0xff]
    %v547 = vld [vmem:[%s540 + $0x30] sm:$0xff]
    %v548 = vld [vmem:[%s540 + $0x38] sm:$0xff]
    %v549 = vld [vmem:[%s540 + $0x40] sm:$0xff]
    %v550 = vld [vmem:[%s540 + $0x48] sm:$0xff]
    %v551 = vld [vmem:[%s540 + $0x50] sm:$0xff]
    %v552 = vld [vmem:[%s540 + $0x58] sm:$0xff]
    %v553 = vld [vmem:[%s540 + $0x60] sm:$0xff]
    %v554 = vld [vmem:[%s540 + $0x68] sm:$0xff]
    %v555 = vld [vmem:[%s540 + $0x70] sm:$0xff]
    %v556 = vld [vmem:[%s540 + $0x78] sm:$0xff]
    %v557 = vld [vmem:[#allocation12 + $0x6] sm:$0x1]
    %v558 = vperm.slane %v557, 0
    %559 = vmatpush.msra.mxu0 %v556
    %560 = vmatpush.msra.mxu0 %v555
    %561 = vmatpush.msra.mxu0 %v554
    %562 = vmatpush.msra.mxu0 %v553
    %563 = vmatpush.msra.mxu0 %v552
    %564 = vmatpush.msra.mxu0 %v551
    %565 = vmatpush.msra.mxu0 %v550
    %566 = vmatpush.msra.mxu0 %v549
    %567 = vmatpush.msra.mxu0 %v548
    %568 = vmatpush.msra.mxu0 %v547
    %569 = vmatpush.msra.mxu0 %v546
    %570 = vmatpush.msra.mxu0 %v545
    %571 = vmatpush.msra.mxu0 %v544
    %572 = vmatpush.msra.mxu0 %v543
    %573 = vmatpush.msra.mxu0 %v542
    %574 = vmatpush.msra.mxu0 %v541
    %575 = vmatmul.f32.gmra.mxu0 %v539
    %v576 = vpop.f32.mrf.mxu0
    %v577 = vadd.f32 %v558, %v576
    %578 = vdwg.mxu0
    %vm579 = vcmp.ge.f32.partialorder %v577, 0.0
    %v580 = vmul.f32 %v577, 0.2
    %v581 = vsel %vm579, %v577, %v580
    %v582 = vmul.f32 %v581, 1.4142135
    %583 = vst [vmem:[%s8] sm:$0xff] %v582
    // Predicated region
    $region62: #{mapping_network_forward.1} parent=1 // pred_check
      _
    $region63: #{mapping_network_forward.1} parent=1 // pred_check_branch
      %585 = sbr.rel (0) target = $region65
    $region64: #{mapping_network_forward.1} parent=1 // pred_region
      _
    $region65: #{mapping_network_forward.1} parent=1 // pred_fallthru
      _
    // Predicated region
    $region66: #{mapping_network_forward.1} parent=1 // pred_check
      _
    $region67: #{mapping_network_forward.1} parent=1 // pred_check_branch
      %587 = sbr.rel (0) target = $region69
    $region68: #{mapping_network_forward.1} parent=1 // pred_region
      _
    $region69: #{mapping_network_forward.1} parent=1 // pred_fallthru
      _
    %588 = vsyncpa [#allocation3], 1
    %589 = vsyncpa [#allocation5], 1
    %590 = vsyncpa [#allocation8], 1
    %591 = vsyncpa [#allocation11], 1

</llo_original>
